<compile_context>
chip_gen: v6e
topology: v6e:2x2x1
jax: 0.10.0
libtpu: 0.0.40
codegen_flags: <defaults>
</compile_context>

<pallas_src>
import functools

import jax
import jax.numpy as jnp
import numpy as np
from jax.experimental import pallas as pl
from jax.experimental.pallas import tpu as pltpu


def _round_up(x, m):
    return ((x + m - 1) // m) * m


def _make_modulator_kernel(num_layers, hp):
    def kernel(z_ref, wz_ref, wh_ref, b_ref, o_ref):
        # z_ref  : (Bt, Din)                 latent batch tile
        # wz_ref : (Din, L*Hp)        bf16   fused z-projection weights (all layers)
        # wh_ref : (max(L-1,1), Hp, Hp) bf16 hidden->hidden weights, layers 1..L-1
        # b_ref  : (1, L*Hp)          f32    fused biases
        # o_ref  : (Bt, L*Hp)                per-layer hiddens, flattened, lane-dense
        z = z_ref[...].astype(wz_ref.dtype)  # bf16 MXU operand

        # One wide matmul covers every layer's z-projection (+ bias): pulls all
        # z-dependent work and the bias adds off the serial h@Wh dependency chain.
        zproj_all = (
            jnp.dot(z, wz_ref[...], preferred_element_type=jnp.float32)
            + b_ref[...].astype(jnp.float32)
        )

        h = None
        for l in range(num_layers):  # static unroll: L is small & known
            zp = zproj_all[:, l * hp:(l + 1) * hp]
            if l == 0:
                h = jnp.maximum(zp, 0.0)
            else:
                h = jnp.maximum(
                    jnp.dot(
                        h.astype(wh_ref.dtype),
                        wh_ref[l - 1],
                        preferred_element_type=jnp.float32,
                    )
                    + zp,
                    0.0,
                )
            # 128-aligned static slice -> unmasked lane-dense store.
            o_ref[:, l * hp:(l + 1) * hp] = h.astype(o_ref.dtype)

    return kernel


@functools.partial(
    jax.jit, static_argnames=("dim_in", "dim_hidden", "num_layers", "block_b")
)
def modulator_forward(z, wz, wh, b, *, dim_in, dim_hidden, num_layers, block_b=None):
    """z: (dim_in,) or (B, dim_in); wz: (dim_in, L*Hp); wh: (max(L-1,1), Hp, Hp); b: (1, L*Hp)."""
    squeeze = z.ndim == 1
    z2 = z.reshape(-1, dim_in)
    bsz = z2.shape[0]
    lhp = wz.shape[-1]
    hp = lhp // num_layers

    out_dtype = z2.dtype
    itemsize = jnp.dtype(out_dtype).itemsize
    # Sublane packing granularity of the output tile: 8 (f32), 16 (bf16), 32 (int8).
    min_sub = max(8, 32 // max(itemsize, 1))
    if block_b is None:
        block_b = min(_round_up(bsz, min_sub), 256)
    block_b = _round_up(block_b, min_sub)

    b_pad = _round_up(bsz, block_b)
    if b_pad != bsz:
        z2 = jnp.concatenate(
            [z2, jnp.zeros((b_pad - bsz, dim_in), z2.dtype)], axis=0
        )

    kernel = _make_modulator_kernel(num_layers, hp)

    # Grid-invariant (weights/bias) inputs: full-array block, constant index_map,
    # single-buffered (no benefit from double-buffering something never re-fetched).
    def _resident_spec(arr):
        n = arr.ndim
        return pl.BlockSpec(
            arr.shape, lambda i, _n=n: (0,) * _n, pipeline_mode=pl.Buffered(1)
        )

    # Explicit VMEM budget: resident weights (single-buffered) + double-buffered
    # z / output tiles, with 2x margin; capped well inside v7x's 64 MiB.
    weight_bytes = (
        wz.size * wz.dtype.itemsize
        + wh.size * wh.dtype.itemsize
        + b.size * b.dtype.itemsize
    )
    io_bytes = 2 * block_b * (dim_in * itemsize + lhp * itemsize)
    vmem_limit = int(min(max(2 * (weight_bytes + io_bytes), 16 << 20), 64 << 20))

    out = pl.pallas_call(
        kernel,
        out_shape=jax.ShapeDtypeStruct((b_pad, lhp), out_dtype),
        grid=(b_pad // block_b,),
        in_specs=[
            pl.BlockSpec((block_b, dim_in), lambda i: (i, 0)),
            _resident_spec(wz),
            _resident_spec(wh),
            _resident_spec(b),
        ],
        out_specs=pl.BlockSpec((block_b, lhp), lambda i: (i, 0)),
        compiler_params=pltpu.CompilerParams(
            dimension_semantics=("parallel",),  # batch tiles are independent
            vmem_limit_bytes=vmem_limit,
        ),
    )(z2, wz, wh, b)

    # (b_pad, L*Hp) -> (bsz, L, dim_hidden): drop batch padding and lane padding.
    out = out[:bsz].reshape(bsz, num_layers, hp)[:, :, :dim_hidden]
    if squeeze:
        return tuple(out[0, i] for i in range(num_layers))
    return tuple(out[:, i] for i in range(num_layers))


def init_params(key, dim_in, dim_hidden, num_layers, dtype=jnp.float32):
    """Deterministic PyTorch-style nn.Linear init; W stored as (in_features, out_features)."""
    weights, biases = [], []
    for ind in range(num_layers):
        fan_in = dim_in if ind == 0 else dim_hidden + dim_in
        key, kw, kb = jax.random.split(key, 3)
        bound = 1.0 / np.sqrt(fan_in)
        W = jax.random.uniform(kw, (fan_in, dim_hidden), dtype, -bound, bound)
        b = jax.random.uniform(kb, (dim_hidden,), dtype, -bound, bound)
        weights.append(W)
        biases.append(b)
    return weights, biases


def pack_params(weights, biases, dim_in, dim_hidden, weight_dtype=jnp.bfloat16):
    """Split W=[W_h;W_z], pad hidden to a multiple of 128, fuse all z-projections
    into one (dim_in, L*Hp) matrix, store weights in bf16 (bias stays f32)."""
    hp = _round_up(dim_hidden, 128)
    num_layers = len(weights)

    wz_wide = jnp.zeros((dim_in, num_layers * hp), weight_dtype)
    b_wide = jnp.zeros((1, num_layers * hp), jnp.float32)
    wh_list = []
    for ind, (W, b) in enumerate(zip(weights, biases)):
        if ind == 0:
            wz = W  # (dim_in, H)
        else:
            wh = W[:dim_hidden]  # (H, H)
            wz = W[dim_hidden:]  # (dim_in, H)
            wh_p = (
                jnp.zeros((hp, hp), weight_dtype)
                .at[:dim_hidden, :dim_hidden]
                .set(wh.astype(weight_dtype))
            )
            wh_list.append(wh_p)
        col = ind * hp
        wz_wide = wz_wide.at[:, col:col + dim_hidden].set(wz.astype(weight_dtype))
        b_wide = b_wide.at[0, col:col + dim_hidden].set(b.astype(jnp.float32))

    if not wh_list:  # num_layers == 1: keep a valid (unused) placeholder slot
        wh_list.append(jnp.zeros((hp, hp), weight_dtype))
    return wz_wide, jnp.stack(wh_list), b_wide


def modulator_ref(z, weights, biases):
    """Pure-JAX f32 reference mirroring the PyTorch forward (works batched too)."""
    x = z
    hiddens = []
    for W, b in zip(weights, biases):
        x = jnp.maximum(x @ W + b, 0.0)
        hiddens.append(x)
        x = jnp.concatenate([x, z], axis=-1)
    return tuple(hiddens)


if __name__ == "__main__":
    dim_in, dim_hidden, num_layers = 32, 64, 3

    key = jax.random.PRNGKey(0)
    key, kz, kzb = jax.random.split(key, 3)
    z = jax.random.normal(kz, (dim_in,), jnp.float32)

    weights, biases = init_params(key, dim_in, dim_hidden, num_layers)
    wz, wh, b = pack_params(weights, biases, dim_in, dim_hidden)

    # Single-latent case (matches the PyTorch module exactly).
    hiddens = modulator_forward(
        z, wz, wh, b,
        dim_in=dim_in, dim_hidden=dim_hidden, num_layers=num_layers,
    )
    hiddens = jax.block_until_ready(hiddens)

    ref = modulator_ref(z, weights, biases)
    for h, r in zip(hiddens, ref):
        assert h.shape == (dim_hidden,)
        # bf16 weight storage with f32 accumulation -> loosened tolerance.
        np.testing.assert_allclose(np.asarray(h), np.asarray(r), rtol=2e-2, atol=2e-2)

    # Batched smoke test (exercises batch padding + the parallel grid axis).
    zb = jax.random.normal(kzb, (5, dim_in), jnp.float32)
    hb = jax.block_until_ready(
        modulator_forward(
            zb, wz, wh, b,
            dim_in=dim_in, dim_hidden=dim_hidden, num_layers=num_layers,
        )
    )
    rb = modulator_ref(zb, weights, biases)
    for h, r in zip(hb, rb):
        assert h.shape == (5, dim_hidden)
        np.testing.assert_allclose(np.asarray(h), np.asarray(r), rtol=2e-2, atol=2e-2)

    print("KERNEL_OK")
</pallas_src>

<mosaic_0001>
module attributes {stable_mosaic.version = 11 : i64} {
  func.func @kernel(%arg0: i32, %arg1: memref<8x32xf32, #tpu.memory_space<vmem>>, %arg2: memref<32x384xbf16, #tpu.memory_space<vmem>>, %arg3: memref<2x128x128xbf16, #tpu.memory_space<vmem>>, %arg4: memref<1x384xf32, #tpu.memory_space<vmem>>, %arg5: memref<8x384xf32, #tpu.memory_space<vmem>>) attributes {dimension_semantics = [#tpu.dimension_semantics<parallel>], iteration_bounds = array<i64: 1>, scalar_prefetch = 0 : i64, scratch_operands = 0 : i64, tpu.core_type = #tpu.core_type<tc>, window_params = [{transform_indices = @transform_0, window_bounds = array<i64: 8, 32>}, {pipeline_mode = #tpu.pipeline_mode<synchronous>, transform_indices = @transform_1, window_bounds = array<i64: 32, 384>}, {pipeline_mode = #tpu.pipeline_mode<synchronous>, transform_indices = @transform_2, window_bounds = array<i64: 2, 128, 128>}, {pipeline_mode = #tpu.pipeline_mode<synchronous>, transform_indices = @transform_3, window_bounds = array<i64: 1, 384>}, {transform_indices = @transform_4, window_bounds = array<i64: 8, 384>}]} {
    %c0 = arith.constant 0 : index
    %c0_0 = arith.constant 0 : index
    %0 = vector.load %arg1[%c0, %c0_0] : memref<8x32xf32, #tpu.memory_space<vmem>>, vector<8x32xf32>
    %1 = arith.truncf %0 : vector<8x32xf32> to vector<8x32xbf16>
    %c0_1 = arith.constant 0 : index
    %c0_2 = arith.constant 0 : index
    %2 = vector.load %arg2[%c0_1, %c0_2] : memref<32x384xbf16, #tpu.memory_space<vmem>>, vector<32x384xbf16>
    %cst = arith.constant dense<0.000000e+00> : vector<8x384xf32>
    %3 = tpu.matmul %1, %2, %cst {dimension_numbers = #tpu.dot_dimension_numbers<[1], [0], [0], [1], [0, 0, 1, 1], [], []>} : vector<8x32xbf16>, vector<32x384xbf16>, vector<8x384xf32> -> vector<8x384xf32>
    %c0_3 = arith.constant 0 : index
    %c0_4 = arith.constant 0 : index
    %4 = vector.load %arg4[%c0_3, %c0_4] : memref<1x384xf32, #tpu.memory_space<vmem>>, vector<1x384xf32>
    %5 = vector.broadcast %4 : vector<1x384xf32> to vector<8x384xf32>
    %6 = arith.addf %3, %5 : vector<8x384xf32>
    %7 = vector.extract_strided_slice %6 {offsets = [0, 0], sizes = [8, 128], strides = [1, 1]} : vector<8x384xf32> to vector<8x128xf32>
    %cst_5 = arith.constant 0.000000e+00 : f32
    %8 = vector.broadcast %cst_5 : f32 to vector<8x128xf32>
    %9 = arith.maximumf %7, %8 : vector<8x128xf32>
    %c0_6 = arith.constant 0 : index
    %c0_7 = arith.constant 0 : index
    %10 = vector.load %arg5[%c0_6, %c0_7] : memref<8x384xf32, #tpu.memory_space<vmem>>, vector<8x128xf32>
    tpu.vector_store %arg5[%c0_6, %c0_7], %9 {strides = array<i32>} : memref<8x384xf32, #tpu.memory_space<vmem>>, vector<8x128xf32>,
    %11 = vector.extract_strided_slice %6 {offsets = [0, 128], sizes = [8, 128], strides = [1, 1]} : vector<8x384xf32> to vector<8x128xf32>
    %12 = arith.truncf %9 : vector<8x128xf32> to vector<8x128xbf16>
    %c0_8 = arith.constant 0 : index
    %c0_9 = arith.constant 0 : index
    %c0_10 = arith.constant 0 : index
    %13 = vector.load %arg3[%c0_8, %c0_9, %c0_10] : memref<2x128x128xbf16, #tpu.memory_space<vmem>>, vector<1x128x128xbf16>
    %14 = vector.shape_cast %13 : vector<1x128x128xbf16> to vector<128x128xbf16>
    %cst_11 = arith.constant dense<0.000000e+00> : vector<8x128xf32>
    %15 = tpu.matmul %12, %14, %cst_11 {dimension_numbers = #tpu.dot_dimension_numbers<[1], [0], [0], [1], [0, 0, 1, 1], [], []>} : vector<8x128xbf16>, vector<128x128xbf16>, vector<8x128xf32> -> vector<8x128xf32>
    %16 = arith.addf %15, %11 : vector<8x128xf32>
    %cst_12 = arith.constant 0.000000e+00 : f32
    %17 = vector.broadcast %cst_12 : f32 to vector<8x128xf32>
    %18 = arith.maximumf %16, %17 : vector<8x128xf32>
    %c0_13 = arith.constant 0 : index
    %c128 = arith.constant 128 : index
    %19 = vector.load %arg5[%c0_13, %c128] : memref<8x384xf32, #tpu.memory_space<vmem>>, vector<8x128xf32>
    tpu.vector_store %arg5[%c0_13, %c128], %18 {strides = array<i32>} : memref<8x384xf32, #tpu.memory_space<vmem>>, vector<8x128xf32>,
    %20 = vector.extract_strided_slice %6 {offsets = [0, 256], sizes = [8, 128], strides = [1, 1]} : vector<8x384xf32> to vector<8x128xf32>
    %21 = arith.truncf %18 : vector<8x128xf32> to vector<8x128xbf16>
    %c1 = arith.constant 1 : index
    %c0_14 = arith.constant 0 : index
    %c0_15 = arith.constant 0 : index
    %22 = vector.load %arg3[%c1, %c0_14, %c0_15] : memref<2x128x128xbf16, #tpu.memory_space<vmem>>, vector<1x128x128xbf16>
    %23 = vector.shape_cast %22 : vector<1x128x128xbf16> to vector<128x128xbf16>
    %cst_16 = arith.constant dense<0.000000e+00> : vector<8x128xf32>
    %24 = tpu.matmul %21, %23, %cst_16 {dimension_numbers = #tpu.dot_dimension_numbers<[1], [0], [0], [1], [0, 0, 1, 1], [], []>} : vector<8x128xbf16>, vector<128x128xbf16>, vector<8x128xf32> -> vector<8x128xf32>
    %25 = arith.addf %24, %20 : vector<8x128xf32>
    %cst_17 = arith.constant 0.000000e+00 : f32
    %26 = vector.broadcast %cst_17 : f32 to vector<8x128xf32>
    %27 = arith.maximumf %25, %26 : vector<8x128xf32>
    %c0_18 = arith.constant 0 : index
    %c256 = arith.constant 256 : index
    %28 = vector.load %arg5[%c0_18, %c256] : memref<8x384xf32, #tpu.memory_space<vmem>>, vector<8x128xf32>
    tpu.vector_store %arg5[%c0_18, %c256], %27 {strides = array<i32>} : memref<8x384xf32, #tpu.memory_space<vmem>>, vector<8x128xf32>,
    return
  }
  func.func @transform_0(%arg0: i32) -> (i32, i32) {
    %c0_i32 = arith.constant 0 : i32
    %c0_i32_0 = arith.constant 0 : i32
    return %arg0, %c0_i32 : i32, i32
  }
  func.func @transform_1(%arg0: i32) -> (i32, i32) {
    %c0_i32 = arith.constant 0 : i32
    %c0_i32_0 = arith.constant 0 : i32
    %c0_i32_1 = arith.constant 0 : i32
    return %c0_i32, %c0_i32_0 : i32, i32
  }
  func.func @transform_2(%arg0: i32) -> (i32, i32, i32) {
    %c0_i32 = arith.constant 0 : i32
    %c0_i32_0 = arith.constant 0 : i32
    %c0_i32_1 = arith.constant 0 : i32
    %c0_i32_2 = arith.constant 0 : i32
    return %c0_i32, %c0_i32_0, %c0_i32_1 : i32, i32, i32
  }
  func.func @transform_3(%arg0: i32) -> (i32, i32) {
    %c0_i32 = arith.constant 0 : i32
    %c0_i32_0 = arith.constant 0 : i32
    %c0_i32_1 = arith.constant 0 : i32
    return %c0_i32, %c0_i32_0 : i32, i32
  }
  func.func @transform_4(%arg0: i32) -> (i32, i32) {
    %c0_i32 = arith.constant 0 : i32
    %c0_i32_0 = arith.constant 0 : i32
    return %arg0, %c0_i32 : i32, i32
  }
}

</mosaic_0001>

<llo_original>
// kernel: modulator_forward.1
$region0: #{modulator_forward.1}
  #allocation0 [shape = 'u32[]', space=smem, size = 0x4, offset = 0x4, fixed_abs, tag = 'smem constant byte address 0x4 - core index']
  #allocation1 [shape = 'u32[144,128]{1,0:T(1,128)}', space=vmem, size = 0x12000, scoped, tag = 'internal scratch']
  %s0 = inlined_call_operand.vmem [shape: f32[8,32], index: 0, kind: input, shape index: {}]
  %s1 = inlined_call_operand.hbm [shape: bf16[32,384], index: 1, kind: input, shape index: {}]
  %s2 = inlined_call_operand.hbm [shape: bf16[2,128,128], index: 2, kind: input, shape index: {}]
  %s3 = inlined_call_operand.vmem [shape: f32[1,384], index: 3, kind: input, shape index: {}]
  %s4 = inlined_call_operand.vmem [shape: f32[8,384], index: 4, kind: output, shape index: {}]
  %s5 = sld [smem:[#allocation0]]
  $region34: #{modulator_forward.1} parent=0
    _
  %s7 = ssub.s32 1, %s5
  %s8 = scalar_select 0, %s7, %s5
  $region1: #{modulator_forward.1} parent=0
    #allocation2 [shape = 'u8[24576]{0}', space=vmem, size = 0x6000, scoped, tag = 'input window, operand 1, single buffered']
    #allocation3 [shape = 's32[1]{0}', space=sflag, size = 0x4, scoped, tag = 'scoped memory for modulator_forward.1']
    #allocation4 [shape = 'u8[65536]{0}', space=vmem, size = 0x10000, scoped, tag = 'input window, operand 2, single buffered']
    #allocation5 [shape = 's32[1]{0}', space=sflag, size = 0x4, scoped, tag = 'scoped memory for modulator_forward.1']
    %9 = vsyncpa [#allocation3], 0
    %10 = vsyncpa [#allocation5], 0
    // Predicated region
    $region2: #{modulator_forward.1} parent=1 // pred_check
      _
    $region3: #{modulator_forward.1} parent=1 // pred_check_branch
      %12 = sbr.rel (0) target = $region5
    $region4: #{modulator_forward.1} parent=1 // pred_region
      _
    $region5: #{modulator_forward.1} parent=1 // pred_fallthru
      _
    // Predicated region
    $region6: #{modulator_forward.1} parent=1 // pred_check
      _
    $region7: #{modulator_forward.1} parent=1 // pred_check_branch
      %14 = sbr.rel (0) target = $region9
    $region8: #{modulator_forward.1} parent=1 // pred_region
      %s16 = ssub.s32 768, 768
      %17 = vsyncadd [#allocation3], %s16
      %s18 = sshll.u32 [#allocation2], 4
      %s19 = int_to_ptr.vmem [resolvable:$true] %s18
      %24 = dma.hbm_to_vmem [thread:$0]  %s1, 768, %s19, [#allocation3], 192, 192, 12
    $region9: #{modulator_forward.1} parent=1 // pred_fallthru
      _
    // Predicated region
    $region10: #{modulator_forward.1} parent=1 // pred_check
      _
    $region11: #{modulator_forward.1} parent=1 // pred_check_branch
      %26 = sbr.rel (0) target = $region13
    $region12: #{modulator_forward.1} parent=1 // pred_region
      %s28 = ssub.s32 2048, 2048
      %29 = vsyncadd [#allocation5], %s28
      %s30 = sshll.u32 [#allocation4], 4
      %s31 = int_to_ptr.vmem [resolvable:$true] %s30
      %36 = dma.hbm_to_vmem [thread:$0]  %s2, 2048, %s31, [#allocation5], 64, 64, 4
    $region13: #{modulator_forward.1} parent=1 // pred_fallthru
      _
    // Predicated region
    $region14: #{modulator_forward.1} parent=1 // pred_check
      _
    $region15: #{modulator_forward.1} parent=1 // pred_check_branch
      %38 = sbr.rel (0) target = $region17
    $region16: #{modulator_forward.1} parent=1 // pred_region
      _
    $region17: #{modulator_forward.1} parent=1 // pred_fallthru
      _
    // Predicated region
    $region18: #{modulator_forward.1} parent=1 // pred_check
      _
    $region19: #{modulator_forward.1} parent=1 // pred_check_branch
      %40 = sbr.rel (0) target = $region21
    $region20: #{modulator_forward.1} parent=1 // pred_region
      %41 = dma.done [#allocation3], 768
    $region21: #{modulator_forward.1} parent=1 // pred_fallthru
      _
    // Predicated region
    $region22: #{modulator_forward.1} parent=1 // pred_check
      _
    $region23: #{modulator_forward.1} parent=1 // pred_check_branch
      %43 = sbr.rel (0) target = $region25
    $region24: #{modulator_forward.1} parent=1 // pred_region
      %44 = dma.done [#allocation5], 2048
    $region25: #{modulator_forward.1} parent=1 // pred_fallthru
      _
    %v46 = vld [vmem:[%s0] sm:$0xff]
    %v47 = vpack.c.bf16 %v46, %v46
    %v48 = vld [vmem:[#allocation2] sm:$0xff]
    %v49 = vld [vmem:[#allocation2 + $0x8] sm:$0xf]
    %v50 = vld [vmem:[#allocation2 + $0xc] sm:$0xff]
    %v51 = vld [vmem:[#allocation2 + $0x14] sm:$0xf]
    %v52 = vld [vmem:[#allocation2 + $0x18] sm:$0xff]
    %v53 = vld [vmem:[#allocation2 + $0x20] sm:$0xf]
    %v54 = vld [vmem:[#allocation2 + $0x24] sm:$0xff]
    %v55 = vld [vmem:[#allocation2 + $0x2c] sm:$0xf]
    %v56 = vld [vmem:[%s3] sm:$0x7]
    %v58 = vlaneseq
    %v59 = vshrl.u32 %v58, 7
    %v60 = vsub.s32 0, %v59
    %v61 = vrot.slane %v56, %v60
    %v62 = vlaneseq
    %v63 = vshrl.u32 %v62, 7
    %v64 = vsub.s32 1, %v63
    %v65 = vrot.slane %v56, %v64
    %v66 = vlaneseq
    %v67 = vshrl.u32 %v66, 7
    %v68 = vsub.s32 2, %v67
    %v69 = vrot.slane %v56, %v68
    %v81 = vunpack.c.l.b16 %v48
    %v82 = vunpack.c.h.b16 %v48
    %v83 = vunpack.c.l.b16 %v49
    %v84 = vunpack.c.l.b16 %v50
    %v85 = vunpack.c.h.b16 %v50
    %v86 = vunpack.c.l.b16 %v51
    %v87 = vunpack.c.l.b16 %v52
    %v88 = vunpack.c.h.b16 %v52
    %v89 = vunpack.c.l.b16 %v53
    %v90 = vunpack.c.l.b16 %v54
    %v91 = vunpack.c.h.b16 %v54
    %v92 = vunpack.c.l.b16 %v55
    %v93 = vpack.c.b16 %v84, %v81
    %v94 = vpack.c.b16 %v85, %v82
    %v95 = vpack.c.b16 %v86, %v83
    %v96 = vpack.c.b16 %v90, %v87
    %v97 = vpack.c.b16 %v91, %v88
    %v98 = vpack.c.b16 %v92, %v89
    %vm105 = vcmask 261120
    %v107 = vsel %vm105, %v47, 0
    %109 = vmatprep.subr.bf16.mxu0 0
    %110 = vmatpush1.bf16.msra.mxu0 0
    %111 = vmatprep.subr.bf16.mxu0 0
    %112 = vmatpush1.bf16.msra.mxu0 0
    %113 = vmatprep.subr.bf16.mxu0 0
    %114 = vmatpush1.bf16.msra.mxu0 0
    %115 = vmatprep.subr.bf16.mxu0 0
    %116 = vmatpush1.bf16.msra.mxu0 0
    %117 = vmatprep.subr.bf16.mxu0 0
    %118 = vmatpush1.bf16.msra.mxu0 0
    %119 = vmatprep.subr.bf16.mxu0 0
    %120 = vmatpush1.bf16.msra.mxu0 0
    %121 = vmatprep.subr.bf16.mxu0 %v97
    %122 = vmatpush1.bf16.msra.mxu0 %v96
    %123 = vmatprep.subr.bf16.mxu0 %v94
    %124 = vmatpush1.bf16.msra.mxu0 %v93
    %125 = vmatprep.subr.bf16.mxu0 0
    %126 = vmatpush2.bf16.msra.mxu0 0
    %127 = vmatprep.subr.bf16.mxu0 0
    %128 = vmatpush2.bf16.msra.mxu0 0
    %129 = vmatprep.subr.bf16.mxu0 0
    %130 = vmatpush2.bf16.msra.mxu0 0
    %131 = vmatprep.subr.bf16.mxu0 0
    %132 = vmatpush2.bf16.msra.mxu0 0
    %133 = vmatprep.subr.bf16.mxu0 0
    %134 = vmatpush2.bf16.msra.mxu0 0
    %135 = vmatprep.subr.bf16.mxu0 0
    %136 = vmatpush2.bf16.msra.mxu0 0
    %137 = vmatprep.subr.bf16.mxu0 0
    %138 = vmatpush2.bf16.msra.mxu0 0
    %139 = vmatprep.subr.bf16.mxu0 0
    %140 = vmatpush2.bf16.msra.mxu0 0
    %141 = vmatprep.mubr.bf16.mxu0 0
    %142 = vmatmul.mubr.bf16.gmra.mxu0 %v107
    %v143 = vpop.f32.mrf.mxu0
    %v144 = vadd.f32 %v61, %v143
    %v145 = vpop.f32.mrf.mxu0
    %v146 = vadd.f32 %v65, %v145
    %v147 = vpop.f32.mrf.mxu0
    %v148 = vpop.f32.mrf.mxu0
    %149 = vdwg.mxu0
    %150 = vmatprep.subr.bf16.mxu0 0
    %151 = vmatpush1.bf16.msra.mxu0 0
    %152 = vmatprep.subr.bf16.mxu0 0
    %153 = vmatpush1.bf16.msra.mxu0 0
    %154 = vmatprep.subr.bf16.mxu0 0
    %155 = vmatpush1.bf16.msra.mxu0 0
    %156 = vmatprep.subr.bf16.mxu0 0
    %157 = vmatpush1.bf16.msra.mxu0 0
    %158 = vmatprep.subr.bf16.mxu0 0
    %159 = vmatpush1.bf16.msra.mxu0 0
    %160 = vmatprep.subr.bf16.mxu0 0
    %161 = vmatpush1.bf16.msra.mxu0 0
    %162 = vmatprep.subr.bf16.mxu0 0
    %163 = vmatpush1.bf16.msra.mxu0 %v98
    %164 = vmatprep.subr.bf16.mxu0 0
    %165 = vmatpush1.bf16.msra.mxu0 %v95
    %166 = vmatprep.subr.bf16.mxu0 0
    %167 = vmatpush2.bf16.msra.mxu0 0
    %168 = vmatprep.subr.bf16.mxu0 0
    %169 = vmatpush2.bf16.msra.mxu0 0
    %170 = vmatprep.subr.bf16.mxu0 0
    %171 = vmatpush2.bf16.msra.mxu0 0
    %172 = vmatprep.subr.bf16.mxu0 0
    %173 = vmatpush2.bf16.msra.mxu0 0
    %174 = vmatprep.subr.bf16.mxu0 0
    %175 = vmatpush2.bf16.msra.mxu0 0
    %176 = vmatprep.subr.bf16.mxu0 0
    %177 = vmatpush2.bf16.msra.mxu0 0
    %178 = vmatprep.subr.bf16.mxu0 0
    %179 = vmatpush2.bf16.msra.mxu0 0
    %180 = vmatprep.subr.bf16.mxu0 0
    %181 = vmatpush2.bf16.msra.mxu0 0
    %182 = vmatprep.mubr.bf16.mxu0 0
    %183 = vmatmul.mubr.bf16.gmra.mxu0 %v107
    %v184 = vpop.f32.mrf.mxu0
    %v185 = vadd.f32 %v69, %v184
    %v186 = vpop.f32.mrf.mxu0
    %v187 = vpop.f32.mrf.mxu0
    %v188 = vpop.f32.mrf.mxu0
    %189 = vdwg.mxu0
    %v190 = vmax.f32 %v144, 0.0
    %191 = vst [vmem:[%s4] sm:$0xff] %v190
    %v192 = vpack.c.bf16 %v190, %v190
    %v193 = vld [vmem:[#allocation4] sm:$0xf]
    %v194 = vld [vmem:[#allocation4 + $0x4] sm:$0xf]
    %v195 = vld [vmem:[#allocation4 + $0x8] sm:$0xf]
    %v196 = vld [vmem:[#allocation4 + $0xc] sm:$0xf]
    %v197 = vld [vmem:[#allocation4 + $0x10] sm:$0xf]
    %v198 = vld [vmem:[#allocation4 + $0x14] sm:$0xf]
    %v199 = vld [vmem:[#allocation4 + $0x18] sm:$0xf]
    %v200 = vld [vmem:[#allocation4 + $0x1c] sm:$0xf]
    %v201 = vld [vmem:[#allocation4 + $0x20] sm:$0xf]
    %v202 = vld [vmem:[#allocation4 + $0x24] sm:$0xf]
    %v203 = vld [vmem:[#allocation4 + $0x28] sm:$0xf]
    %v204 = vld [vmem:[#allocation4 + $0x2c] sm:$0xf]
    %v205 = vld [vmem:[#allocation4 + $0x30] sm:$0xf]
    %v206 = vld [vmem:[#allocation4 + $0x34] sm:$0xf]
    %v207 = vld [vmem:[#allocation4 + $0x38] sm:$0xf]
    %v208 = vld [vmem:[#allocation4 + $0x3c] sm:$0xf]
    %v225 = vunpack.c.l.b16 %v193
    %v226 = vunpack.c.l.b16 %v194
    %v227 = vunpack.c.l.b16 %v195
    %v228 = vunpack.c.l.b16 %v196
    %v229 = vunpack.c.l.b16 %v197
    %v230 = vunpack.c.l.b16 %v198
    %v231 = vunpack.c.l.b16 %v199
    %v232 = vunpack.c.l.b16 %v200
    %v233 = vunpack.c.l.b16 %v201
    %v234 = vunpack.c.l.b16 %v202
    %v235 = vunpack.c.l.b16 %v203
    %v236 = vunpack.c.l.b16 %v204
    %v237 = vunpack.c.l.b16 %v205
    %v238 = vunpack.c.l.b16 %v206
    %v239 = vunpack.c.l.b16 %v207
    %v240 = vunpack.c.l.b16 %v208
    %v241 = vpack.c.b16 %v226, %v225
    %v242 = vpack.c.b16 %v228, %v227
    %v243 = vpack.c.b16 %v230, %v229
    %v244 = vpack.c.b16 %v232, %v231
    %v245 = vpack.c.b16 %v234, %v233
    %v246 = vpack.c.b16 %v236, %v235
    %v247 = vpack.c.b16 %v238, %v237
    %v248 = vpack.c.b16 %v240, %v239
    %257 = vmatprep.subr.bf16.mxu0 0
    %258 = vmatpush1.bf16.msra.mxu0 %v248
    %259 = vmatprep.subr.bf16.mxu0 0
    %260 = vmatpush1.bf16.msra.mxu0 %v247
    %261 = vmatprep.subr.bf16.mxu0 0
    %262 = vmatpush1.bf16.msra.mxu0 %v246
    %263 = vmatprep.subr.bf16.mxu0 0
    %264 = vmatpush1.bf16.msra.mxu0 %v245
    %265 = vmatprep.subr.bf16.mxu0 0
    %266 = vmatpush1.bf16.msra.mxu0 %v244
    %267 = vmatprep.subr.bf16.mxu0 0
    %268 = vmatpush1.bf16.msra.mxu0 %v243
    %269 = vmatprep.subr.bf16.mxu0 0
    %270 = vmatpush1.bf16.msra.mxu0 %v242
    %271 = vmatprep.subr.bf16.mxu0 0
    %272 = vmatpush1.bf16.msra.mxu0 %v241
    %273 = vmatprep.subr.bf16.mxu0 0
    %274 = vmatpush2.bf16.msra.mxu0 0
    %275 = vmatprep.subr.bf16.mxu0 0
    %276 = vmatpush2.bf16.msra.mxu0 0
    %277 = vmatprep.subr.bf16.mxu0 0
    %278 = vmatpush2.bf16.msra.mxu0 0
    %279 = vmatprep.subr.bf16.mxu0 0
    %280 = vmatpush2.bf16.msra.mxu0 0
    %281 = vmatprep.subr.bf16.mxu0 0
    %282 = vmatpush2.bf16.msra.mxu0 0
    %283 = vmatprep.subr.bf16.mxu0 0
    %284 = vmatpush2.bf16.msra.mxu0 0
    %285 = vmatprep.subr.bf16.mxu0 0
    %286 = vmatpush2.bf16.msra.mxu0 0
    %287 = vmatprep.subr.bf16.mxu0 0
    %288 = vmatpush2.bf16.msra.mxu0 0
    %289 = vmatprep.mubr.bf16.mxu0 0
    %290 = vmatmul.mubr.bf16.gmra.mxu0 %v192
    %v291 = vpop.f32.mrf.mxu0
    %v292 = vadd.f32 %v146, %v291
    %v293 = vpop.f32.mrf.mxu0
    %v294 = vpop.f32.mrf.mxu0
    %v295 = vpop.f32.mrf.mxu0
    %296 = vdwg.mxu0
    %v297 = vmax.f32 %v292, 0.0
    %298 = vst [vmem:[%s4 + $0x8] sm:$0xff] %v297
    %v299 = vpack.c.bf16 %v297, %v297
    %s300 = scalar_lea.vmem [#allocation4], 64
    %v301 = vld [vmem:[%s300] sm:$0xf]
    %v302 = vld [vmem:[%s300 + $0x4] sm:$0xf]
    %v303 = vld [vmem:[%s300 + $0x8] sm:$0xf]
    %v304 = vld [vmem:[%s300 + $0xc] sm:$0xf]
    %v305 = vld [vmem:[%s300 + $0x10] sm:$0xf]
    %v306 = vld [vmem:[%s300 + $0x14] sm:$0xf]
    %v307 = vld [vmem:[%s300 + $0x18] sm:$0xf]
    %v308 = vld [vmem:[%s300 + $0x1c] sm:$0xf]
    %v309 = vld [vmem:[%s300 + $0x20] sm:$0xf]
    %v310 = vld [vmem:[%s300 + $0x24] sm:$0xf]
    %v311 = vld [vmem:[%s300 + $0x28] sm:$0xf]
    %v312 = vld [vmem:[%s300 + $0x2c] sm:$0xf]
    %v313 = vld [vmem:[%s300 + $0x30] sm:$0xf]
    %v314 = vld [vmem:[%s300 + $0x34] sm:$0xf]
    %v315 = vld [vmem:[%s300 + $0x38] sm:$0xf]
    %v316 = vld [vmem:[%s300 + $0x3c] sm:$0xf]
    %v333 = vunpack.c.l.b16 %v301
    %v334 = vunpack.c.l.b16 %v302
    %v335 = vunpack.c.l.b16 %v303
    %v336 = vunpack.c.l.b16 %v304
    %v337 = vunpack.c.l.b16 %v305
    %v338 = vunpack.c.l.b16 %v306
    %v339 = vunpack.c.l.b16 %v307
    %v340 = vunpack.c.l.b16 %v308
    %v341 = vunpack.c.l.b16 %v309
    %v342 = vunpack.c.l.b16 %v310
    %v343 = vunpack.c.l.b16 %v311
    %v344 = vunpack.c.l.b16 %v312
    %v345 = vunpack.c.l.b16 %v313
    %v346 = vunpack.c.l.b16 %v314
    %v347 = vunpack.c.l.b16 %v315
    %v348 = vunpack.c.l.b16 %v316
    %v349 = vpack.c.b16 %v334, %v333
    %v350 = vpack.c.b16 %v336, %v335
    %v351 = vpack.c.b16 %v338, %v337
    %v352 = vpack.c.b16 %v340, %v339
    %v353 = vpack.c.b16 %v342, %v341
    %v354 = vpack.c.b16 %v344, %v343
    %v355 = vpack.c.b16 %v346, %v345
    %v356 = vpack.c.b16 %v348, %v347
    %365 = vmatprep.subr.bf16.mxu0 0
    %366 = vmatpush1.bf16.msra.mxu0 %v356
    %367 = vmatprep.subr.bf16.mxu0 0
    %368 = vmatpush1.bf16.msra.mxu0 %v355
    %369 = vmatprep.subr.bf16.mxu0 0
    %370 = vmatpush1.bf16.msra.mxu0 %v354
    %371 = vmatprep.subr.bf16.mxu0 0
    %372 = vmatpush1.bf16.msra.mxu0 %v353
    %373 = vmatprep.subr.bf16.mxu0 0
    %374 = vmatpush1.bf16.msra.mxu0 %v352
    %375 = vmatprep.subr.bf16.mxu0 0
    %376 = vmatpush1.bf16.msra.mxu0 %v351
    %377 = vmatprep.subr.bf16.mxu0 0
    %378 = vmatpush1.bf16.msra.mxu0 %v350
    %379 = vmatprep.subr.bf16.mxu0 0
    %380 = vmatpush1.bf16.msra.mxu0 %v349
    %381 = vmatprep.subr.bf16.mxu0 0
    %382 = vmatpush2.bf16.msra.mxu0 0
    %383 = vmatprep.subr.bf16.mxu0 0
    %384 = vmatpush2.bf16.msra.mxu0 0
    %385 = vmatprep.subr.bf16.mxu0 0
    %386 = vmatpush2.bf16.msra.mxu0 0
    %387 = vmatprep.subr.bf16.mxu0 0
    %388 = vmatpush2.bf16.msra.mxu0 0
    %389 = vmatprep.subr.bf16.mxu0 0
    %390 = vmatpush2.bf16.msra.mxu0 0
    %391 = vmatprep.subr.bf16.mxu0 0
    %392 = vmatpush2.bf16.msra.mxu0 0
    %393 = vmatprep.subr.bf16.mxu0 0
    %394 = vmatpush2.bf16.msra.mxu0 0
    %395 = vmatprep.subr.bf16.mxu0 0
    %396 = vmatpush2.bf16.msra.mxu0 0
    %397 = vmatprep.mubr.bf16.mxu0 0
    %398 = vmatmul.mubr.bf16.gmra.mxu0 %v299
    %v399 = vpop.f32.mrf.mxu0
    %v400 = vadd.f32 %v185, %v399
    %v401 = vpop.f32.mrf.mxu0
    %v402 = vpop.f32.mrf.mxu0
    %v403 = vpop.f32.mrf.mxu0
    %404 = vdwg.mxu0
    %v405 = vmax.f32 %v400, 0.0
    %406 = vst [vmem:[%s4 + $0x10] sm:$0xff] %v405
    // Predicated region
    $region26: #{modulator_forward.1} parent=1 // pred_check
      _
    $region27: #{modulator_forward.1} parent=1 // pred_check_branch
      %408 = sbr.rel (0) target = $region29
    $region28: #{modulator_forward.1} parent=1 // pred_region
      _
    $region29: #{modulator_forward.1} parent=1 // pred_fallthru
      _
    // Predicated region
    $region30: #{modulator_forward.1} parent=1 // pred_check
      _
    $region31: #{modulator_forward.1} parent=1 // pred_check_branch
      %410 = sbr.rel (0) target = $region33
    $region32: #{modulator_forward.1} parent=1 // pred_region
      _
    $region33: #{modulator_forward.1} parent=1 // pred_fallthru
      _
    %411 = vsyncpa [#allocation3], 1
    %412 = vsyncpa [#allocation5], 1

</llo_original>
